<compile_context>
chip_gen: v7x
topology: tpu7x:2x2x1
jax: 0.10.0
libtpu: 0.0.40
codegen_flags: <defaults>
</compile_context>

<pallas_src>
import functools

import jax
import jax.numpy as jnp
from jax.experimental import pallas as pl
from jax.experimental.pallas import tpu as pltpu

MASK = -1.0


def _lse_pooling_kernel(x_ref, o_ref, m_sc, s_sc, *, inv_t, tile_m, m_valid):
    """One (tile_rows, tile_m) block; online LSE over grid axis 1."""
    k = pl.program_id(1)
    num_k = pl.num_programs(1)

    @pl.when(k == 0)
    def _init():
        m_sc[...] = jnp.full_like(m_sc, -jnp.inf)
        s_sc[...] = jnp.zeros_like(s_sc)

    raw = x_ref[...]                       # original dtype (bf16 stays bf16)
    is_masked = raw == MASK                # sims == -1, compared pre-cast

    def _accumulate(x):
        # Running max on *un-scaled* values: max(x / t) == max(x) / t, t > 0.
        m_prev = m_sc[...]
        m_new = jnp.maximum(m_prev, jnp.max(x, axis=-1, keepdims=True))
        safe_m = jnp.where(jnp.isfinite(m_new), m_new, 0.0)   # all-masked rows
        p = jnp.exp((x - safe_m) * inv_t)                     # masked -> exp(-inf) = 0
        alpha = jnp.exp((m_prev - safe_m) * inv_t)            # rescale old partial sum
        s_sc[...] = alpha * s_sc[...] + jnp.sum(p, axis=-1, keepdims=True)
        m_sc[...] = m_new

    if m_valid is None:
        _accumulate(jnp.where(is_masked, -jnp.inf, raw.astype(jnp.float32)))
    else:
        # Only the FINAL M block is partial -> keep the column-bound mask off
        # the hot path; every earlier block pays only the `== -1` select.
        @pl.when(k != num_k - 1)
        def _full_block():
            _accumulate(jnp.where(is_masked, -jnp.inf,
                                  raw.astype(jnp.float32)))

        @pl.when(k == num_k - 1)
        def _partial_block():
            cols = jax.lax.broadcasted_iota(jnp.int32, raw.shape, 1)
            limit = m_valid - k * tile_m    # scalar offset folded, no per-elem add
            _accumulate(jnp.where(is_masked | (cols >= limit),
                                  -jnp.inf, raw.astype(jnp.float32)))

    @pl.when(k == num_k - 1)
    def _finalize():
        m_f = m_sc[...]
        lse = jnp.where(jnp.isfinite(m_f),
                        m_f * inv_t + jnp.log(s_sc[...]),
                        -jnp.inf)
        # NOTE: (tile_rows, 1) output block -> masked stores; output traffic is
        # ~M x smaller than input reads, so a lane-dense relayout is left out.
        o_ref[...] = lse.astype(o_ref.dtype)


def _chip_budget():
    """(target input-block bytes, per-block element cap, VMEM-limit cap)."""
    # Conservative default = v7x (64 MiB physical VMEM, 3.2 TB/s HBM).
    target_in_bytes = 4 * 1024 * 1024
    elem_cap = 2 * 1024 * 1024             # keeps f32 working slabs <= 8 MiB
    vmem_cap = 48 * 1024 * 1024
    try:
        info = pltpu.get_tpu_info()
        if getattr(info, "vmem_capacity_bytes", 0) >= 100 * 1024 * 1024:
            # v5e / v6e: 128 MiB physical VMEM -> bigger blocks, higher limit.
            target_in_bytes = 8 * 1024 * 1024
            vmem_cap = 80 * 1024 * 1024
    except Exception:
        pass
    return target_in_bytes, elem_cap, vmem_cap


def _choose_tiles(R, M, tile_elems):
    """(8,128)-legal (tile_rows, tile_m) targeting `tile_elems` per block."""
    # Reduction (lane) axis: keep full rows resident when they fit (single
    # M step, no online-rescale passes); otherwise tile in multiples of 128.
    if 8 * M <= tile_elems:
        tile_m = M
    else:
        tile_m = max(128, (tile_elems // 8) // 128 * 128)
        if tile_m >= M:
            tile_m = M
    # Row (sublane) axis: multiples of 8 (or the full extent).
    rows = max(1, tile_elems // tile_m)
    if rows >= R or R <= 8:
        tile_rows = R
    else:
        tile_rows = max(8, (min(rows, R) // 8) * 8)
    # v7x megacore: if the row ("parallel") axis collapsed to a single grid
    # step while M is tiled, split it so both TensorCores get work.
    if tile_rows == R and R > 8 and pl.cdiv(M, tile_m) > 1:
        tile_rows = max(8, ((pl.cdiv(R, 2) + 7) // 8) * 8)
    return tile_rows, tile_m


def lse_pooling(sims, temperature=0.1, *, _tile_elems=None):
    assert sims.ndim == 3, "LSEPooling expects a 3-D input (B, N, M)"
    assert temperature > 0, "temperature must be positive"
    B, N, M = sims.shape
    R = B * N
    # Collapse (B, N) -> rows: free relayout of contiguous data, dense vregs.
    x2 = sims.reshape(R, M)

    itemsize = jnp.dtype(sims.dtype).itemsize
    target_in_bytes, elem_cap, vmem_cap = _chip_budget()
    tile_elems = _tile_elems if _tile_elems is not None else max(
        8 * 128, min(target_in_bytes // itemsize, elem_cap))

    tile_rows, tile_m = _choose_tiles(R, M, tile_elems)
    grid = (pl.cdiv(R, tile_rows), pl.cdiv(M, tile_m))
    m_valid = M if (M % tile_m) != 0 else None

    in_tile_bytes = tile_rows * tile_m * itemsize
    f32_tile_bytes = tile_rows * tile_m * 4
    # Double-buffered input + a few f32 full-tile temporaries + scratch/out.
    vmem_limit = int(min(vmem_cap,
                         max(32 * 1024 * 1024,
                             2 * in_tile_bytes + 4 * f32_tile_bytes
                             + (1 << 20))))

    # Output dtype parity with torch.logsumexp (returns the input dtype).
    out_dtype = sims.dtype if jnp.issubdtype(sims.dtype, jnp.floating) \
        else jnp.float32

    kernel = functools.partial(
        _lse_pooling_kernel,
        inv_t=float(1.0 / temperature),
        tile_m=tile_m,
        m_valid=m_valid,
    )

    out2 = pl.pallas_call(
        kernel,
        out_shape=jax.ShapeDtypeStruct((R, 1), out_dtype),
        grid_spec=pltpu.PrefetchScalarGridSpec(
            num_scalar_prefetch=0,
            grid=grid,
            in_specs=[pl.BlockSpec((tile_rows, tile_m),
                                   lambda r, k: (r, k))],
            out_specs=pl.BlockSpec((tile_rows, 1),
                                   lambda r, k: (r, 0)),
            scratch_shapes=[pltpu.VMEM((tile_rows, 1), jnp.float32),
                            pltpu.VMEM((tile_rows, 1), jnp.float32)],
        ),
        compiler_params=pltpu.CompilerParams(
            dimension_semantics=("parallel", "arbitrary"),
            vmem_limit_bytes=vmem_limit,
        ),
    )(x2)

    return out2.reshape(B, N)


def _reference(sims, temperature=0.1):
    x = jnp.where(sims == MASK, -jnp.inf, sims) / temperature
    return jax.scipy.special.logsumexp(x, axis=-1)


def _check(out, ref):
    finite = jnp.isfinite(ref)
    assert bool(jnp.all(jnp.isfinite(out) == finite))
    assert bool(jnp.allclose(jnp.where(finite, out, 0.0),
                             jnp.where(finite, ref, 0.0),
                             atol=1e-4, rtol=1e-4))


if __name__ == "__main__":
    key = jax.random.PRNGKey(0)

    # Case 1: small, single-block problem (matches the module's typical use).
    B, N, M = 2, 16, 16
    sims = jax.random.uniform(key, (B, N, M), dtype=jnp.float32)
    sims = sims.at[0, 3, 5].set(MASK)      # one masked entry
    sims = sims.at[1, 7, :].set(MASK)      # one fully masked row -> -inf
    out = lse_pooling(sims, temperature=0.1)
    jax.block_until_ready(out)
    assert out.shape == (B, N)
    _check(out, _reference(sims, temperature=0.1))

    # Case 2: force tiny tiles to exercise the multi-block online reduction,
    # the partial (M % tile_m != 0) last block, and partial row blocks.
    B2, N2, M2 = 2, 9, 300
    sims2 = jax.random.uniform(jax.random.PRNGKey(0), (B2, N2, M2),
                               dtype=jnp.float32)
    sims2 = sims2.at[0, 1, 7].set(MASK)
    sims2 = sims2.at[1, 2, :].set(MASK)
    out2 = lse_pooling(sims2, temperature=0.1, _tile_elems=1024)
    jax.block_until_ready(out2)
    assert out2.shape == (B2, N2)
    _check(out2, _reference(sims2, temperature=0.1))

    print("KERNEL_OK")
</pallas_src>

<mosaic_0001>
module attributes {stable_mosaic.version = 11 : i64} {
  func.func @_lse_pooling_kernel(%arg0: i32, %arg1: i32, %arg2: memref<32x16xf32, #tpu.memory_space<vmem>>, %arg3: memref<32x1xf32, #tpu.memory_space<vmem>>, %arg4: memref<32x1xf32, #tpu.memory_space<vmem>>, %arg5: memref<32x1xf32, #tpu.memory_space<vmem>>) attributes {dimension_semantics = [#tpu.dimension_semantics<parallel>, #tpu.dimension_semantics<arbitrary>], iteration_bounds = array<i64: 1, 1>, scalar_prefetch = 0 : i64, scratch_operands = 2 : i64, tpu.core_type = #tpu.core_type<tc>, window_params = [{transform_indices = @transform_0, window_bounds = array<i64: 32, 16>}, {transform_indices = @transform_1, window_bounds = array<i64: 32, 1>}]} {
    %c0_i32 = arith.constant 0 : i32
    %0 = arith.cmpi eq, %arg1, %c0_i32 : i32
    %1 = arith.extui %0 : i1 to i32
    %c0_i32_0 = arith.constant 0 : i32
    %2 = arith.cmpi ne, %1, %c0_i32_0 : i32
    scf.if %2 {
      %cst_19 = arith.constant 0xFF800000 : f32
      %35 = vector.broadcast %cst_19 : f32 to vector<32x1xf32>
      %c0_20 = arith.constant 0 : index
      %c0_21 = arith.constant 0 : index
      %36 = vector.load %arg4[%c0_20, %c0_21] : memref<32x1xf32, #tpu.memory_space<vmem>>, vector<32x1xf32>
      tpu.vector_store %arg4[%c0_20, %c0_21], %35 {strides = array<i32>} : memref<32x1xf32, #tpu.memory_space<vmem>>, vector<32x1xf32>,
      %cst_22 = arith.constant 0.000000e+00 : f32
      %37 = vector.broadcast %cst_22 : f32 to vector<32x1xf32>
      %c0_23 = arith.constant 0 : index
      %c0_24 = arith.constant 0 : index
      %38 = vector.load %arg5[%c0_23, %c0_24] : memref<32x1xf32, #tpu.memory_space<vmem>>, vector<32x1xf32>
      tpu.vector_store %arg5[%c0_23, %c0_24], %37 {strides = array<i32>} : memref<32x1xf32, #tpu.memory_space<vmem>>, vector<32x1xf32>,
    } else {
    }
    %c0 = arith.constant 0 : index
    %c0_1 = arith.constant 0 : index
    %3 = vector.load %arg2[%c0, %c0_1] : memref<32x16xf32, #tpu.memory_space<vmem>>, vector<32x16xf32>
    %cst = arith.constant -1.000000e+00 : f32
    %4 = vector.broadcast %cst : f32 to vector<32x16xf32>
    %5 = arith.cmpf oeq, %3, %4 : vector<32x16xf32>
    %cst_2 = arith.constant 0xFF800000 : f32
    %6 = vector.broadcast %cst_2 : f32 to vector<32x16xf32>
    %7 = arith.select %5, %6, %3 : vector<32x16xi1>, vector<32x16xf32>
    %c0_3 = arith.constant 0 : index
    %c0_4 = arith.constant 0 : index
    %8 = vector.load %arg4[%c0_3, %c0_4] : memref<32x1xf32, #tpu.memory_space<vmem>>, vector<32x1xf32>
    %cst_5 = arith.constant dense<0xFF800000> : vector<32xf32>
    %9 = vector.multi_reduction <maximumf>, %7, %cst_5 [1] : vector<32x16xf32> to vector<32xf32>
    %10 = vector.shape_cast %9 : vector<32xf32> to vector<32x1xf32>
    %11 = arith.maximumf %8, %10 : vector<32x1xf32>
    %12 = tpu.weird %11 : vector<32x1xf32> -> vector<32x1xi1>
    %cst_6 = arith.constant dense<true> : vector<32x1xi1>
    %13 = arith.xori %12, %cst_6 : vector<32x1xi1>
    %cst_7 = arith.constant 0.000000e+00 : f32
    %14 = vector.broadcast %cst_7 : f32 to vector<32x1xf32>
    %15 = arith.select %13, %11, %14 : vector<32x1xi1>, vector<32x1xf32>
    %16 = vector.broadcast %15 : vector<32x1xf32> to vector<32x16xf32>
    %17 = arith.subf %7, %16 : vector<32x16xf32>
    %cst_8 = arith.constant 1.000000e+01 : f32
    %18 = vector.broadcast %cst_8 : f32 to vector<32x16xf32>
    %19 = arith.mulf %17, %18 : vector<32x16xf32>
    %20 = math.exp %19 : vector<32x16xf32>
    %21 = arith.subf %8, %15 : vector<32x1xf32>
    %cst_9 = arith.constant 1.000000e+01 : f32
    %22 = vector.broadcast %cst_9 : f32 to vector<32x1xf32>
    %23 = arith.mulf %21, %22 : vector<32x1xf32>
    %24 = math.exp %23 : vector<32x1xf32>
    %c0_10 = arith.constant 0 : index
    %c0_11 = arith.constant 0 : index
    %25 = vector.load %arg5[%c0_10, %c0_11] : memref<32x1xf32, #tpu.memory_space<vmem>>, vector<32x1xf32>
    %26 = arith.mulf %24, %25 : vector<32x1xf32>
    %cst_12 = arith.constant dense<0.000000e+00> : vector<32xf32>
    %27 = vector.multi_reduction <add>, %20, %cst_12 [1] : vector<32x16xf32> to vector<32xf32>
    %28 = vector.shape_cast %27 : vector<32xf32> to vector<32x1xf32>
    %29 = arith.addf %26, %28 : vector<32x1xf32>
    %c0_13 = arith.constant 0 : index
    %c0_14 = arith.constant 0 : index
    %30 = vector.load %arg5[%c0_13, %c0_14] : memref<32x1xf32, #tpu.memory_space<vmem>>, vector<32x1xf32>
    tpu.vector_store %arg5[%c0_13, %c0_14], %29 {strides = array<i32>} : memref<32x1xf32, #tpu.memory_space<vmem>>, vector<32x1xf32>,
    %c0_15 = arith.constant 0 : index
    %c0_16 = arith.constant 0 : index
    %31 = vector.load %arg4[%c0_15, %c0_16] : memref<32x1xf32, #tpu.memory_space<vmem>>, vector<32x1xf32>
    tpu.vector_store %arg4[%c0_15, %c0_16], %11 {strides = array<i32>} : memref<32x1xf32, #tpu.memory_space<vmem>>, vector<32x1xf32>,
    %c0_i32_17 = arith.constant 0 : i32
    %32 = arith.cmpi eq, %arg1, %c0_i32_17 : i32
    %33 = arith.extui %32 : i1 to i32
    %c0_i32_18 = arith.constant 0 : i32
    %34 = arith.cmpi ne, %33, %c0_i32_18 : i32
    scf.if %34 {
      %c0_19 = arith.constant 0 : index
      %c0_20 = arith.constant 0 : index
      %35 = vector.load %arg4[%c0_19, %c0_20] : memref<32x1xf32, #tpu.memory_space<vmem>>, vector<32x1xf32>
      %36 = tpu.weird %35 : vector<32x1xf32> -> vector<32x1xi1>
      %cst_21 = arith.constant dense<true> : vector<32x1xi1>
      %37 = arith.xori %36, %cst_21 : vector<32x1xi1>
      %cst_22 = arith.constant 1.000000e+01 : f32
      %38 = vector.broadcast %cst_22 : f32 to vector<32x1xf32>
      %39 = arith.mulf %35, %38 : vector<32x1xf32>
      %c0_23 = arith.constant 0 : index
      %c0_24 = arith.constant 0 : index
      %40 = vector.load %arg5[%c0_23, %c0_24] : memref<32x1xf32, #tpu.memory_space<vmem>>, vector<32x1xf32>
      %41 = math.log %40 : vector<32x1xf32>
      %42 = arith.addf %39, %41 : vector<32x1xf32>
      %cst_25 = arith.constant 0xFF800000 : f32
      %43 = vector.broadcast %cst_25 : f32 to vector<32x1xf32>
      %44 = arith.select %37, %42, %43 : vector<32x1xi1>, vector<32x1xf32>
      %c0_26 = arith.constant 0 : index
      %c0_27 = arith.constant 0 : index
      %45 = vector.load %arg3[%c0_26, %c0_27] : memref<32x1xf32, #tpu.memory_space<vmem>>, vector<32x1xf32>
      tpu.vector_store %arg3[%c0_26, %c0_27], %44 {strides = array<i32>} : memref<32x1xf32, #tpu.memory_space<vmem>>, vector<32x1xf32>,
    } else {
    }
    return
  }
  func.func @transform_0(%arg0: i32, %arg1: i32) -> (i32, i32) {
    %c0_i32 = arith.constant 0 : i32
    return %arg0, %arg1 : i32, i32
  }
  func.func @transform_1(%arg0: i32, %arg1: i32) -> (i32, i32) {
    %c0_i32 = arith.constant 0 : i32
    %c0_i32_0 = arith.constant 0 : i32
    return %arg0, %c0_i32 : i32, i32
  }
}

</mosaic_0001>

<llo_original>
// kernel: tpu_custom_call.1
$region0: #{tpu_custom_call.1}
  #allocation0 [shape = 'u32[]', space=smem, size = 0x4, offset = 0x4, fixed_abs, tag = 'smem constant byte address 0x4 - core index']
  #allocation1 [shape = 'u32[144,128]{1,0:T(1,128)}', space=vmem, size = 0x12000, scoped, tag = 'internal scratch']
  #allocation2 [shape = 'f32[32,1]{1,0:T(8,128)}', space=vmem, size = 0x4000, scoped, tag = 'scratch operand']
  #allocation3 [shape = 'f32[32,1]{1,0:T(8,128)}', space=vmem, size = 0x4000, scoped, tag = 'scratch operand']
  %s0 = inlined_call_operand.vmem [shape: f32[32,16], index: 0, kind: input, shape index: {}]
  %s1 = inlined_call_operand.vmem [shape: f32[32,1], index: 1, kind: output, shape index: {}]
  %s2 = sld [smem:[#allocation0]]
  $region22: #{tpu_custom_call.1} parent=0
    _
  %s4 = ssub.s32 1, %s2
  %s5 = scalar_select 0, %s4, %s2
  // Predicated region
  $region2: #{tpu_custom_call.1} parent=0 // pred_check
    _
  $region3: #{tpu_custom_call.1} parent=0 // pred_check_branch
    %7 = sbr.rel (0) target = $region5
  $region4: #{tpu_custom_call.1} parent=0 // pred_region
    _
  $region5: #{tpu_custom_call.1} parent=0 // pred_fallthru
    _
  %p8 = scmp.eq.s32.totalorder 0, 0
  // Predicated region
  $region6: #{tpu_custom_call.1} parent=0 // pred_check
    %p9 = pneg %p8
  $region7: #{tpu_custom_call.1} parent=0 // pred_check_branch
    %11 = sbr.rel (%p9) target = $region9
  $region8: #{tpu_custom_call.1} parent=0 // pred_region
    %vm12 = vcmask 7168
    %13 = vst.msk [vmem:[#allocation2] sm:$0xff] %vm12, -inf
    %14 = vst.msk [vmem:[#allocation2 + $0x8] sm:$0xff] %vm12, -inf
    %15 = vst.msk [vmem:[#allocation2 + $0x10] sm:$0xff] %vm12, -inf
    %16 = vst.msk [vmem:[#allocation2 + $0x18] sm:$0xff] %vm12, -inf
    %17 = vst.msk [vmem:[#allocation3] sm:$0xff] %vm12, 0.0
    %18 = vst.msk [vmem:[#allocation3 + $0x8] sm:$0xff] %vm12, 0.0
    %19 = vst.msk [vmem:[#allocation3 + $0x10] sm:$0xff] %vm12, 0.0
    %20 = vst.msk [vmem:[#allocation3 + $0x18] sm:$0xff] %vm12, 0.0
  $region9: #{tpu_custom_call.1} parent=0 // pred_fallthru
    _
  %v21 = vld [vmem:[%s0] sm:$0xff]
  %v22 = vld [vmem:[%s0 + $0x8] sm:$0xff]
  %v23 = vld [vmem:[%s0 + $0x10] sm:$0xff]
  %v24 = vld [vmem:[%s0 + $0x18] sm:$0xff]
  %vm25 = vcmp.eq.f32.partialorder %v21, -1.0
  %vm26 = vcmp.eq.f32.partialorder %v22, -1.0
  %vm27 = vcmp.eq.f32.partialorder %v23, -1.0
  %vm28 = vcmp.eq.f32.partialorder %v24, -1.0
  %v29 = vsel %vm25, -inf, %v21
  %v30 = vsel %vm26, -inf, %v22
  %v31 = vsel %vm27, -inf, %v23
  %v32 = vsel %vm28, -inf, %v24
  %v33 = vld [vmem:[#allocation2] sm:$0xff]
  %v34 = vld [vmem:[#allocation2 + $0x8] sm:$0xff]
  %v35 = vld [vmem:[#allocation2 + $0x10] sm:$0xff]
  %v36 = vld [vmem:[#allocation2 + $0x18] sm:$0xff]
  %vm37 = vcmask 130048
  %v38 = vsel %vm37, %v29, -inf
  %39 = vmax.xlane.f32.xlu0 %v38
  %v40 = vpop.xlane.xlu0 %39
  %v41 = vsel %vm37, %v30, -inf
  %42 = vmax.xlane.f32.xlu0 %v41
  %v43 = vpop.xlane.xlu0 %42
  %v44 = vsel %vm37, %v31, -inf
  %45 = vmax.xlane.f32.xlu0 %v44
  %v46 = vpop.xlane.xlu0 %45
  %v47 = vsel %vm37, %v32, -inf
  %48 = vmax.xlane.f32.xlu0 %v47
  %v49 = vpop.xlane.xlu0 %48
  %v50 = vmax.f32 %v33, %v40
  %v51 = vmax.f32 %v34, %v43
  %v52 = vmax.f32 %v35, %v46
  %v53 = vmax.f32 %v36, %v49
  %vm54 = vweird.f32 %v50
  %vm55 = vweird.f32 %v51
  %vm56 = vweird.f32 %v52
  %vm57 = vweird.f32 %v53
  %vm58 = vmxor %vm54, 1
  %vm59 = vmxor %vm55, 1
  %vm60 = vmxor %vm56, 1
  %vm61 = vmxor %vm57, 1
  %v62 = vsel %vm58, %v50, 0.0
  %v63 = vsel %vm59, %v51, 0.0
  %v64 = vsel %vm60, %v52, 0.0
  %v65 = vsel %vm61, %v53, 0.0
  %67 = vset.pattern.permute.xlu0 0
  %68 = vperm.xlu0 %67, %v62
  %v69 = vpop.permute.xlu0 %68
  %72 = vset.pattern.permute.xlu0 0
  %73 = vperm.xlu0 %72, %v63
  %v74 = vpop.permute.xlu0 %73
  %77 = vset.pattern.permute.xlu0 0
  %78 = vperm.xlu0 %77, %v64
  %v79 = vpop.permute.xlu0 %78
  %82 = vset.pattern.permute.xlu0 0
  %83 = vperm.xlu0 %82, %v65
  %v84 = vpop.permute.xlu0 %83
  %v86 = vsub.f32 %v29, %v69
  %v87 = vsub.f32 %v30, %v74
  %v88 = vsub.f32 %v31, %v79
  %v89 = vsub.f32 %v32, %v84
  %v90 = vmul.f32 %v86, 10.0
  %v91 = vmul.f32 %v87, 10.0
  %v92 = vmul.f32 %v88, 10.0
  %v93 = vmul.f32 %v89, 10.0
  %v94 = vmul.f32 %v90, 1.442695
  %v95 = vpow.pop %v94
  %v96 = vmul.f32 %v91, 1.442695
  %v97 = vpow.pop %v96
  %v98 = vmul.f32 %v92, 1.442695
  %v99 = vpow.pop %v98
  %v100 = vmul.f32 %v93, 1.442695
  %v101 = vpow.pop %v100
  %v102 = vsub.f32 %v33, %v62
  %v103 = vsub.f32 %v34, %v63
  %v104 = vsub.f32 %v35, %v64
  %v105 = vsub.f32 %v36, %v65
  %v106 = vmul.f32 %v102, 10.0
  %v107 = vmul.f32 %v103, 10.0
  %v108 = vmul.f32 %v104, 10.0
  %v109 = vmul.f32 %v105, 10.0
  %v110 = vmul.f32 %v106, 1.442695
  %v111 = vpow.pop %v110
  %v112 = vmul.f32 %v107, 1.442695
  %v113 = vpow.pop %v112
  %v114 = vmul.f32 %v108, 1.442695
  %v115 = vpow.pop %v114
  %v116 = vmul.f32 %v109, 1.442695
  %v117 = vpow.pop %v116
  %v118 = vld [vmem:[#allocation3] sm:$0xff]
  %v119 = vld [vmem:[#allocation3 + $0x8] sm:$0xff]
  %v120 = vld [vmem:[#allocation3 + $0x10] sm:$0xff]
  %v121 = vld [vmem:[#allocation3 + $0x18] sm:$0xff]
  %v122 = vmul.f32 %v111, %v118
  %v123 = vmul.f32 %v113, %v119
  %v124 = vmul.f32 %v115, %v120
  %v125 = vmul.f32 %v117, %v121
  %v126 = vsel %vm37, %v95, 0.0
  %127 = vadd.xlane.f32.xlu0 %v126
  %v128 = vpop.xlane.xlu0 %127
  %v129 = vsel %vm37, %v97, 0.0
  %130 = vadd.xlane.f32.xlu0 %v129
  %v131 = vpop.xlane.xlu0 %130
  %v132 = vsel %vm37, %v99, 0.0
  %133 = vadd.xlane.f32.xlu0 %v132
  %v134 = vpop.xlane.xlu0 %133
  %v135 = vsel %vm37, %v101, 0.0
  %136 = vadd.xlane.f32.xlu0 %v135
  %v137 = vpop.xlane.xlu0 %136
  %v138 = vadd.f32 %v122, %v128
  %v139 = vadd.f32 %v123, %v131
  %v140 = vadd.f32 %v124, %v134
  %v141 = vadd.f32 %v125, %v137
  %vm142 = vcmask 7168
  %143 = vst.msk [vmem:[#allocation3] sm:$0xff] %vm142, %v138
  %144 = vst.msk [vmem:[#allocation3 + $0x8] sm:$0xff] %vm142, %v139
  %145 = vst.msk [vmem:[#allocation3 + $0x10] sm:$0xff] %vm142, %v140
  %146 = vst.msk [vmem:[#allocation3 + $0x18] sm:$0xff] %vm142, %v141
  %147 = vst.msk [vmem:[#allocation2] sm:$0xff] %vm142, %v50
  %148 = vst.msk [vmem:[#allocation2 + $0x8] sm:$0xff] %vm142, %v51
  %149 = vst.msk [vmem:[#allocation2 + $0x10] sm:$0xff] %vm142, %v52
  %150 = vst.msk [vmem:[#allocation2 + $0x18] sm:$0xff] %vm142, %v53
  // Predicated region
  $region10: #{tpu_custom_call.1} parent=0 // pred_check
    %p151 = pneg %p8
  $region11: #{tpu_custom_call.1} parent=0 // pred_check_branch
    %153 = sbr.rel (%p151) target = $region13
  $region12: #{tpu_custom_call.1} parent=0 // pred_region
    %v154 = vld [vmem:[#allocation2] sm:$0xff]
    %v155 = vld [vmem:[#allocation2 + $0x8] sm:$0xff]
    %v156 = vld [vmem:[#allocation2 + $0x10] sm:$0xff]
    %v157 = vld [vmem:[#allocation2 + $0x18] sm:$0xff]
    %vm158 = vweird.f32 %v154
    %vm159 = vweird.f32 %v155
    %vm160 = vweird.f32 %v156
    %vm161 = vweird.f32 %v157
    %vm162 = vmxor %vm158, 1
    %vm163 = vmxor %vm159, 1
    %vm164 = vmxor %vm160, 1
    %vm165 = vmxor %vm161, 1
    %v166 = vmul.f32 %v154, 10.0
    %v167 = vmul.f32 %v155, 10.0
    %v168 = vmul.f32 %v156, 10.0
    %v169 = vmul.f32 %v157, 10.0
    %v170 = vld [vmem:[#allocation3] sm:$0xff]
    %v171 = vld [vmem:[#allocation3 + $0x8] sm:$0xff]
    %v172 = vld [vmem:[#allocation3 + $0x10] sm:$0xff]
    %v173 = vld [vmem:[#allocation3 + $0x18] sm:$0xff]
    %v174 = vlog2.pop %v170
    %v175 = vmul.f32 %v174, 0.6931472
    %v176 = vlog2.pop %v171
    %v177 = vmul.f32 %v176, 0.6931472
    %v178 = vlog2.pop %v172
    %v179 = vmul.f32 %v178, 0.6931472
    %v180 = vlog2.pop %v173
    %v181 = vmul.f32 %v180, 0.6931472
    %v182 = vadd.f32 %v166, %v175
    %v183 = vadd.f32 %v167, %v177
    %v184 = vadd.f32 %v168, %v179
    %v185 = vadd.f32 %v169, %v181
    %v186 = vsel %vm162, %v182, -inf
    %v187 = vsel %vm163, %v183, -inf
    %v188 = vsel %vm164, %v184, -inf
    %v189 = vsel %vm165, %v185, -inf
    %190 = vst.msk [vmem:[%s1] sm:$0xff] %vm142, %v186
    %191 = vst.msk [vmem:[%s1 + $0x8] sm:$0xff] %vm142, %v187
    %192 = vst.msk [vmem:[%s1 + $0x10] sm:$0xff] %vm142, %v188
    %193 = vst.msk [vmem:[%s1 + $0x18] sm:$0xff] %vm142, %v189
  $region13: #{tpu_custom_call.1} parent=0 // pred_fallthru
    _
  // Predicated region
  $region14: #{tpu_custom_call.1} parent=0 // pred_check
    _
  $region15: #{tpu_custom_call.1} parent=0 // pred_check_branch
    %195 = sbr.rel (0) target = $region17
  $region16: #{tpu_custom_call.1} parent=0 // pred_region
    _
  $region17: #{tpu_custom_call.1} parent=0 // pred_fallthru
    _
  // Predicated region
  $region18: #{tpu_custom_call.1} parent=0 // pred_check
    _
  $region19: #{tpu_custom_call.1} parent=0 // pred_check_branch
    %197 = sbr.rel (0) target = $region21
  $region20: #{tpu_custom_call.1} parent=0 // pred_region
    _
  $region21: #{tpu_custom_call.1} parent=0 // pred_fallthru
    _

</llo_original>
